<compile_context>
chip_gen: v6e
topology: v6e:2x2x1
jax: 0.10.0
libtpu: 0.0.40
codegen_flags: <defaults>
</compile_context>

<pallas_src>
import functools

import jax
import jax.numpy as jnp
from jax import lax
from jax.experimental import pallas as pl
from jax.experimental.pallas import tpu as pltpu


def _round_up(x, m):
    return ((x + m - 1) // m) * m


def _stats_kernel(x_ref, colsum_ref, colsq_ref, *, n_rows, tile_rows):
    """Accumulate column sums and column sums-of-squares over node tiles."""
    i = pl.program_id(0)

    @pl.when(i == 0)
    def _():
        colsum_ref[...] = jnp.zeros_like(colsum_ref)
        colsq_ref[...] = jnp.zeros_like(colsq_ref)

    x = x_ref[...].astype(jnp.float32)                       # (TN, D)
    if n_rows % tile_rows != 0:
        # mask rows of the (padded) last tile that lie past the real node count
        row = lax.broadcasted_iota(jnp.int32, x.shape, 0) + i * tile_rows
        x = jnp.where(row < n_rows, x, 0.0)
    colsum_ref[...] += jnp.sum(x, axis=0, keepdims=True)     # (1, D)
    colsq_ref[...] += jnp.sum(x * x, axis=0, keepdims=True)  # (1, D)


def _apply_kernel(x_ref, colmean_ref, gmul_ref, o_ref, *, mode, scale, eps):
    """Apply PairNorm to one (TN, D) node tile. All math in f32."""
    x = x_ref[...].astype(jnp.float32)        # (TN, D)
    cm = colmean_ref[...]                     # (1, D) f32, broadcasts over rows

    if mode == "PN":
        # gmul = scale * rsqrt(eps + mean_i ||x_i - mu||^2), precomputed (scalar)
        o_ref[...] = ((x - cm) * gmul_ref[0]).astype(o_ref.dtype)
    elif mode == "PN-SI":
        xc = x - cm
        row_sq = jnp.sum(xc * xc, axis=1, keepdims=True)          # (TN, 1)
        o_ref[...] = (xc * (scale * lax.rsqrt(eps + row_sq))).astype(o_ref.dtype)
    elif mode == "PN-SCS":
        row_sq = jnp.sum(x * x, axis=1, keepdims=True)             # (TN, 1)
        o_ref[...] = (x * (scale * lax.rsqrt(eps + row_sq)) - cm).astype(o_ref.dtype)
    else:  # pragma: no cover - static check
        raise ValueError(f"unknown PairNorm mode {mode!r}")


def pairnorm(x, mode="PN", scale=1.0, eps=1e-6, tile_rows=None):
    """PairNorm forward. x: [num_nodes, feat_dim] (f32 or bf16)."""
    assert mode in ("None", "PN", "PN-SI", "PN-SCS")
    if mode == "None":
        return x  # identity: no kernel launch, no HBM round trip

    n, d = x.shape
    dp = _round_up(d, 128)                    # lane-dense last dim
    x_in = jnp.pad(x, ((0, 0), (0, dp - d))) if dp != d else x

    # ~2 MiB (f32) node tiles by default; multiple of 16 rows (bf16 sublane pack).
    if tile_rows is None:
        tile_rows = (2 * 1024 * 1024) // (dp * 4)
    tn = max(16, (int(tile_rows) // 16) * 16)
    grid = (pl.cdiv(n, tn),)

    itemsize = jnp.dtype(x.dtype).itemsize
    tile_bytes = tn * dp * itemsize
    # in + out, double buffered, plus headroom; v5e scoped default is only 16 MiB.
    vmem_limit = int(min(100 * 2**20, max(8 * 2**20, 6 * tile_bytes)))

    # ---------------- pass 1: streaming global stats ----------------
    col_sum, col_sq = pl.pallas_call(
        functools.partial(_stats_kernel, n_rows=n, tile_rows=tn),
        out_shape=(jax.ShapeDtypeStruct((1, dp), jnp.float32),
                   jax.ShapeDtypeStruct((1, dp), jnp.float32)),
        grid_spec=pltpu.PrefetchScalarGridSpec(
            num_scalar_prefetch=0,
            grid=grid,
            in_specs=[pl.BlockSpec((tn, dp), lambda i: (i, 0))],
            out_specs=(pl.BlockSpec((1, dp), lambda i: (0, 0)),
                       pl.BlockSpec((1, dp), lambda i: (0, 0)))),
        compiler_params=pltpu.CompilerParams(
            dimension_semantics=("arbitrary",),      # accumulator across the grid
            vmem_limit_bytes=vmem_limit),
        cost_estimate=pl.CostEstimate(
            flops=3 * n * dp, transcendentals=0,
            bytes_accessed=n * dp * itemsize + 2 * dp * 4),
    )(x_in)

    inv_n = 1.0 / float(n)
    col_mean = col_sum * inv_n                               # (1, dp) f32
    if mode == "PN":
        # mean row-norm^2 via streaming identity; clamp tiny negative rounding.
        # (Precision note: for data with mean >> std prefer a centered 2nd pass.)
        mean_sq = jnp.maximum(
            jnp.sum(col_sq) * inv_n - jnp.sum(col_mean * col_mean), 0.0)
        gmul = (float(scale) * lax.rsqrt(float(eps) + mean_sq)).reshape(1)
        gmul = gmul.astype(jnp.float32)
    else:
        gmul = jnp.ones((1,), jnp.float32)                   # unused

    # ---------------- pass 2: apply normalization ----------------
    out = pl.pallas_call(
        functools.partial(_apply_kernel, mode=mode,
                          scale=float(scale), eps=float(eps)),
        out_shape=jax.ShapeDtypeStruct((n, dp), x.dtype),
        grid_spec=pltpu.PrefetchScalarGridSpec(
            num_scalar_prefetch=0,
            grid=grid,
            in_specs=[pl.BlockSpec((tn, dp), lambda i: (i, 0)),
                      pl.BlockSpec((1, dp), lambda i: (0, 0)),
                      pl.BlockSpec(memory_space=pltpu.MemorySpace.SMEM)],
            out_specs=pl.BlockSpec((tn, dp), lambda i: (i, 0))),
        compiler_params=pltpu.CompilerParams(
            dimension_semantics=("parallel",),       # independent tiles -> 2 TCs on v7x
            vmem_limit_bytes=vmem_limit),
        cost_estimate=pl.CostEstimate(
            flops=4 * n * dp,
            transcendentals=0 if mode == "PN" else n,
            bytes_accessed=2 * n * dp * itemsize + dp * 4),
    )(x_in, col_mean, gmul)

    return out[:, :d] if dp != d else out


def pairnorm_ref(x, mode="PN", scale=1.0, eps=1e-6):
    """Pure-JAX reference mirroring the PyTorch module exactly."""
    if mode == "None":
        return x
    col_mean = x.mean(axis=0)
    if mode == "PN":
        xc = x - col_mean
        rownorm_mean = jnp.sqrt(eps + jnp.mean(jnp.sum(xc * xc, axis=1)))
        return scale * xc / rownorm_mean
    if mode == "PN-SI":
        xc = x - col_mean
        rn = jnp.sqrt(eps + jnp.sum(xc * xc, axis=1, keepdims=True))
        return scale * xc / rn
    if mode == "PN-SCS":
        rn = jnp.sqrt(eps + jnp.sum(x * x, axis=1, keepdims=True))
        return scale * x / rn - col_mean
    raise ValueError(mode)


if __name__ == "__main__":
    key = jax.random.PRNGKey(0)
    k1, k2 = jax.random.split(key)

    # (a) node count NOT a multiple of the tile (exercises partial-tile masking),
    #     lane-dense feature dim.
    x1 = jax.random.normal(k1, (1000, 128), jnp.float32)
    # (b) small graph with a non-128-multiple feature dim (exercises D padding).
    x2 = jax.random.normal(k2, (200, 96), jnp.float32)

    for x in (x1, x2):
        for mode in ("None", "PN", "PN-SI", "PN-SCS"):
            out = jax.block_until_ready(pairnorm(x, mode=mode, scale=1.0,
                                                 tile_rows=256))
            ref = pairnorm_ref(x, mode=mode, scale=1.0)
            assert out.shape == x.shape
            assert jnp.allclose(out, ref, atol=1e-4, rtol=1e-4), (x.shape, mode)

    # bf16 I/O (all arithmetic still f32 inside the kernels)
    xb = x1.astype(jnp.bfloat16)
    outb = jax.block_until_ready(pairnorm(xb, mode="PN", scale=1.0, tile_rows=256))
    refb = pairnorm_ref(xb.astype(jnp.float32), mode="PN", scale=1.0)
    assert outb.dtype == jnp.bfloat16
    assert jnp.allclose(outb.astype(jnp.float32), refb, atol=5e-2, rtol=5e-2)

    print("KERNEL_OK")
</pallas_src>

<mosaic_0001>
module attributes {stable_mosaic.version = 11 : i64} {
  func.func @_stats_kernel(%arg0: i32, %arg1: memref<256x128xf32, #tpu.memory_space<vmem>>, %arg2: memref<1x128xf32, #tpu.memory_space<vmem>>, %arg3: memref<1x128xf32, #tpu.memory_space<vmem>>) attributes {dimension_semantics = [#tpu.dimension_semantics<arbitrary>], iteration_bounds = array<i64: 4>, scalar_prefetch = 0 : i64, scratch_operands = 0 : i64, tpu.core_type = #tpu.core_type<tc>, window_params = [{transform_indices = @transform_0, window_bounds = array<i64: 256, 128>}, {pipeline_mode = #tpu.pipeline_mode<synchronous>, transform_indices = @transform_1, window_bounds = array<i64: 1, 128>}, {pipeline_mode = #tpu.pipeline_mode<synchronous>, transform_indices = @transform_2, window_bounds = array<i64: 1, 128>}]} {
    %c0_i32 = arith.constant 0 : i32
    %0 = arith.cmpi eq, %arg0, %c0_i32 : i32
    %1 = arith.extui %0 : i1 to i32
    %c0_i32_0 = arith.constant 0 : i32
    %2 = arith.cmpi ne, %1, %c0_i32_0 : i32
    scf.if %2 {
      %cst_12 = arith.constant 0.000000e+00 : f32
      %23 = vector.broadcast %cst_12 : f32 to vector<1x128xf32>
      %c0_13 = arith.constant 0 : index
      %c0_14 = arith.constant 0 : index
      %24 = vector.load %arg2[%c0_13, %c0_14] : memref<1x128xf32, #tpu.memory_space<vmem>>, vector<1x128xf32>
      tpu.vector_store %arg2[%c0_13, %c0_14], %23 {strides = array<i32>} : memref<1x128xf32, #tpu.memory_space<vmem>>, vector<1x128xf32>,
      %cst_15 = arith.constant 0.000000e+00 : f32
      %25 = vector.broadcast %cst_15 : f32 to vector<1x128xf32>
      %c0_16 = arith.constant 0 : index
      %c0_17 = arith.constant 0 : index
      %26 = vector.load %arg3[%c0_16, %c0_17] : memref<1x128xf32, #tpu.memory_space<vmem>>, vector<1x128xf32>
      tpu.vector_store %arg3[%c0_16, %c0_17], %25 {strides = array<i32>} : memref<1x128xf32, #tpu.memory_space<vmem>>, vector<1x128xf32>,
    } else {
    }
    %c0 = arith.constant 0 : index
    %c0_1 = arith.constant 0 : index
    %3 = vector.load %arg1[%c0, %c0_1] : memref<256x128xf32, #tpu.memory_space<vmem>>, vector<256x128xf32>
    %4 = tpu.iota {dimensions = array<i32: 0>} : vector<256x128xi32>
    %c256_i32 = arith.constant 256 : i32
    %5 = arith.muli %arg0, %c256_i32 : i32
    %6 = vector.broadcast %5 : i32 to vector<256x128xi32>
    %7 = arith.addi %4, %6 : vector<256x128xi32>
    %c1000_i32 = arith.constant 1000 : i32
    %8 = vector.broadcast %c1000_i32 : i32 to vector<256x128xi32>
    %9 = arith.cmpi slt, %7, %8 : vector<256x128xi32>
    %cst = arith.constant 0.000000e+00 : f32
    %10 = vector.broadcast %cst : f32 to vector<256x128xf32>
    %11 = arith.select %9, %3, %10 : vector<256x128xi1>, vector<256x128xf32>
    %c0_2 = arith.constant 0 : index
    %c0_3 = arith.constant 0 : index
    %12 = vector.load %arg2[%c0_2, %c0_3] : memref<1x128xf32, #tpu.memory_space<vmem>>, vector<1x128xf32>
    %cst_4 = arith.constant dense<0.000000e+00> : vector<128xf32>
    %13 = vector.multi_reduction <add>, %11, %cst_4 [0] : vector<256x128xf32> to vector<128xf32>
    %14 = vector.shape_cast %13 : vector<128xf32> to vector<1x128xf32>
    %15 = arith.addf %12, %14 : vector<1x128xf32>
    %c0_5 = arith.constant 0 : index
    %c0_6 = arith.constant 0 : index
    %16 = vector.load %arg2[%c0_5, %c0_6] : memref<1x128xf32, #tpu.memory_space<vmem>>, vector<1x128xf32>
    tpu.vector_store %arg2[%c0_5, %c0_6], %15 {strides = array<i32>} : memref<1x128xf32, #tpu.memory_space<vmem>>, vector<1x128xf32>,
    %c0_7 = arith.constant 0 : index
    %c0_8 = arith.constant 0 : index
    %17 = vector.load %arg3[%c0_7, %c0_8] : memref<1x128xf32, #tpu.memory_space<vmem>>, vector<1x128xf32>
    %18 = arith.mulf %11, %11 : vector<256x128xf32>
    %cst_9 = arith.constant dense<0.000000e+00> : vector<128xf32>
    %19 = vector.multi_reduction <add>, %18, %cst_9 [0] : vector<256x128xf32> to vector<128xf32>
    %20 = vector.shape_cast %19 : vector<128xf32> to vector<1x128xf32>
    %21 = arith.addf %17, %20 : vector<1x128xf32>
    %c0_10 = arith.constant 0 : index
    %c0_11 = arith.constant 0 : index
    %22 = vector.load %arg3[%c0_10, %c0_11] : memref<1x128xf32, #tpu.memory_space<vmem>>, vector<1x128xf32>
    tpu.vector_store %arg3[%c0_10, %c0_11], %21 {strides = array<i32>} : memref<1x128xf32, #tpu.memory_space<vmem>>, vector<1x128xf32>,
    return
  }
  func.func @transform_0(%arg0: i32) -> (i32, i32) {
    %c0_i32 = arith.constant 0 : i32
    %c0_i32_0 = arith.constant 0 : i32
    return %arg0, %c0_i32 : i32, i32
  }
  func.func @transform_1(%arg0: i32) -> (i32, i32) {
    %c0_i32 = arith.constant 0 : i32
    %c0_i32_0 = arith.constant 0 : i32
    %c0_i32_1 = arith.constant 0 : i32
    return %c0_i32, %c0_i32_0 : i32, i32
  }
  func.func @transform_2(%arg0: i32) -> (i32, i32) {
    %c0_i32 = arith.constant 0 : i32
    %c0_i32_0 = arith.constant 0 : i32
    %c0_i32_1 = arith.constant 0 : i32
    return %c0_i32, %c0_i32_0 : i32, i32
  }
}

</mosaic_0001>

<llo_original>
// kernel: tpu_custom_call.1
$region0: #{tpu_custom_call.1}
  #allocation0 [shape = 'u32[]', space=smem, size = 0x4, offset = 0x4, fixed_abs, tag = 'smem constant byte address 0x4 - core index']
  #allocation1 [shape = 'u32[144,128]{1,0:T(1,128)}', space=vmem, size = 0x12000, scoped, tag = 'internal scratch']
  %s0 = inlined_call_operand.hbm [shape: f32[1000,128], index: 0, kind: input, shape index: {}]
  %s1 = inlined_call_operand.hbm [shape: f32[1,128], index: 1, kind: output, shape index: {0}]
  %s2 = inlined_call_operand.hbm [shape: f32[1,128], index: 2, kind: output, shape index: {1}]
  %3 = xla_tuple %s1, %s2
  %s4 = sld [smem:[#allocation0]]
  $region53: #{tpu_custom_call.1} parent=0
    _
  %s6 = ssub.s32 1, %s4
  %s7 = scalar_select 0, %s6, %s4
  $region1: #{tpu_custom_call.1} parent=0
    #allocation2 [shape = 'u8[262144]{0}', space=vmem, size = 0x40000, scoped, tag = 'input window, operand 0']
    #allocation3 [shape = 's32[2]{0}', space=sflag, size = 0x8, scoped, tag = 'scoped memory for tpu_custom_call.1']
    #allocation4 [shape = 's32[2]{0}', space=sflag, size = 0x8, scoped, tag = 'scoped memory for tpu_custom_call.1']
    #allocation5 [shape = 'u8[512]{0}', space=vmem, size = 0x400, scoped, tag = 'output window, operand 0, single buffered']
    #allocation6 [shape = 'u8[512]{0}', space=vmem, size = 0x400, scoped, tag = 'output window, operand 1, single buffered']
    #allocation7 [shape = 's32[1]{0}', space=sflag, size = 0x4, scoped, tag = 'scoped memory for tpu_custom_call.1']
    %8 = vsyncpa [#allocation3], 0
    %s9 = scalar_lea.sflag [#allocation3], 1
    %10 = vsyncpa %s9, 0
    %11 = vsyncpa [#allocation4], 0
    %12 = vsyncpa [#allocation7], 0
    loop: start=0, step=1, limit=6
    $region2: #{tpu_custom_call.1} parent=1 // loop_pre_header
      _
    $region3: #{tpu_custom_call.1} parent=1 // loop_header
      %s14 = sphi 0, %s18
      %p15 = scmp.ge.s32.totalorder %s14, 6
      %s24 = sphi 0, %s26
      %s27 = sphi 0, %s24
      %s28 = sphi 0, %s27
      %s44 = sphi 0, %s28
      %s48 = sphi 0, %s48
      %s50 = sphi 0, %s48
      %s51 = sphi 0, %s50
      %s65 = sphi 0, %s51
      %s69 = sphi 0, %s69
      %s71 = sphi 0, %s69
      %s72 = sphi 0, %s71
      %s86 = sphi 0, %s72
    $region4: #{tpu_custom_call.1} parent=1 // loop_header_branch
      %17 = sbr.rel (%p15) target = $region8
    $region5: #{tpu_custom_call.1} parent=1 // loop_body
      %s19 = ssub.s32 %s14, 1
      %s20 = ssub.s32 %s14, 2
      %s21 = sadd.s32 %s14, 1
      %s22 = ssub.s32 %s14, %s21
      %p23 = scmp.eq.s32.totalorder %s22, 0
      %s25 = sadd.s32 %s24, 1
      %s26 = scalar_select %p23, %s24, %s25
      %p29 = pneg %p23
      %p30 = scmp.eq.s32.totalorder %s14, 3
      %p31 = por %p29, %p30
      %p32 = scmp.ne.s32.totalorder %s24, %s27
      %p33 = scmp.eq.s32.totalorder %s14, 0
      %p34 = por %p32, %p33
      %p35 = scmp.ne.s32.totalorder %s24, %s27
      %p36 = scmp.eq.s32.totalorder %s19, 3
      %p37 = por %p35, %p36
      %p38 = scmp.ne.s32.totalorder %s27, %s28
      %p39 = scmp.eq.s32.totalorder %s19, 0
      %p40 = por %p38, %p39
      %p41 = scmp.ne.s32.totalorder %s27, %s28
      %p42 = scmp.eq.s32.totalorder %s20, 3
      %p43 = por %p41, %p42
      %p45 = scmp.ne.s32.totalorder %s28, %s44
      %p46 = scmp.eq.s32.totalorder %s20, 0
      %p47 = por %p45, %p46
      %s49 = sadd.s32 %s48, 1
      %p52 = scmp.eq.s32.totalorder %s14, 3
      %p53 = scmp.ne.s32.totalorder %s48, %s50
      %p54 = scmp.eq.s32.totalorder %s14, 0
      %p55 = por %p53, %p54
      %p56 = scmp.ne.s32.totalorder %s48, %s50
      %p57 = scmp.eq.s32.totalorder %s19, 3
      %p58 = por %p56, %p57
      %p59 = scmp.ne.s32.totalorder %s50, %s51
      %p60 = scmp.eq.s32.totalorder %s19, 0
      %p61 = por %p59, %p60
      %p62 = scmp.ne.s32.totalorder %s50, %s51
      %p63 = scmp.eq.s32.totalorder %s20, 3
      %p64 = por %p62, %p63
      %p66 = scmp.ne.s32.totalorder %s51, %s65
      %p67 = scmp.eq.s32.totalorder %s20, 0
      %p68 = por %p66, %p67
      %s70 = sadd.s32 %s69, 1
      %p73 = scmp.eq.s32.totalorder %s14, 3
      %p74 = scmp.ne.s32.totalorder %s69, %s71
      %p75 = scmp.eq.s32.totalorder %s14, 0
      %p76 = por %p74, %p75
      %p77 = scmp.ne.s32.totalorder %s69, %s71
      %p78 = scmp.eq.s32.totalorder %s19, 3
      %p79 = por %p77, %p78
      %p80 = scmp.ne.s32.totalorder %s71, %s72
      %p81 = scmp.eq.s32.totalorder %s19, 0
      %p82 = por %p80, %p81
      %p83 = scmp.ne.s32.totalorder %s71, %s72
      %p84 = scmp.eq.s32.totalorder %s20, 3
      %p85 = por %p83, %p84
      %p87 = scmp.ne.s32.totalorder %s72, %s86
      %p88 = scmp.eq.s32.totalorder %s20, 0
      %p89 = por %p87, %p88
      %p90 = scmp.le.s32.totalorder 1, %s14
      %p91 = scmp.lt.s32.totalorder %s14, 5
      %p92 = pnand %p90, %p91
      %p93 = pneg %p92
      // Predicated region
      $region9: #{tpu_custom_call.1} parent=5 // pred_check
        _
      $region10: #{tpu_custom_call.1} parent=5 // pred_check_branch
        %95 = sbr.rel (%p92) target = $region12
      $region11: #{tpu_custom_call.1} parent=5 // pred_region
        %s96 = ssub.s32 %s14, 1
      $region12: #{tpu_custom_call.1} parent=5 // pred_fallthru
        _
      %p97 = scmp.lt.s32.totalorder %s14, 4
      // Predicated region
      $region13: #{tpu_custom_call.1} parent=5 // pred_check
        %p98 = pneg %p97
      $region14: #{tpu_custom_call.1} parent=5 // pred_check_branch
        %100 = sbr.rel (%p98) target = $region16
      $region15: #{tpu_custom_call.1} parent=5 // pred_region
        // Predicated region
        $region17: #{tpu_custom_call.1} parent=15 // pred_check
          %p101 = pneg %p34
        $region18: #{tpu_custom_call.1} parent=15 // pred_check_branch
          %103 = sbr.rel (%p101) target = $region20
        $region19: #{tpu_custom_call.1} parent=15 // pred_region
          %s104 = sand.u32 %s24, 1
          %s105 = scalar_lea.sflag [#allocation3], %s104
          %s106 = sand.u32 %s24, 1
          %s107 = smul.addr %s106, 256
          %s108 = scalar_lea.vmem [#allocation2], %s107
          %s109 = smul.u32 32, %s14
          %s110 = ssub.s32 125, %s109
          %p111 = scmp.lt.s32.totalorder %s110, 32
          %s112 = scalar_select %p111, %s110, 32
          %s113 = smul.u32 128, %s112
          %s115 = ssub.s32 4096, %s113
          %116 = vsyncadd %s105, %s115
          %p117 = scmp.ne.s32.totalorder 0, %s113
          %s118 = smul.addr %s109, 128
          %s119 = scalar_lea.hbm %s0, %s118
          %s120 = smul.u32 8, %s112
          %s121 = sshll.u32 %s108, 4
          %s122 = int_to_ptr.vmem [resolvable:$true] %s121
          %s123 = sshll.u32 %s120, 4
          %127 = dma.hbm_to_vmem [thread:$0]  (%p117), %s119, %s123, %s122, %s105, 128, 128, 8
        $region20: #{tpu_custom_call.1} parent=15 // pred_fallthru
          _
      $region16: #{tpu_custom_call.1} parent=5 // pred_fallthru
        _
      %p128 = scmp.le.s32.totalorder 1, %s14
      %p129 = scmp.lt.s32.totalorder %s14, 5
      %p130 = pnand %p128, %p129
      %p131 = pneg %p130
      // Predicated region
      $region21: #{tpu_custom_call.1} parent=5 // pred_check
        _
      $region22: #{tpu_custom_call.1} parent=5 // pred_check_branch
        %133 = sbr.rel (%p130) target = $region24
      $region23: #{tpu_custom_call.1} parent=5 // pred_region
        %s134 = ssub.s32 %s14, 1
        %s135 = sand.u32 %s27, 1
        %s136 = scalar_lea.sflag [#allocation3], %s135
        %s137 = sand.u32 %s27, 1
        %s138 = smul.addr %s137, 256
        %s139 = scalar_lea.vmem [#allocation2], %s138
        // Predicated region
        $region25: #{tpu_custom_call.1} parent=23 // pred_check
          %p140 = pneg %p40
        $region26: #{tpu_custom_call.1} parent=23 // pred_check_branch
          %142 = sbr.rel (%p140) target = $region28
        $region27: #{tpu_custom_call.1} parent=23 // pred_region
          %143 = dma.done %s136, 4096
        $region28: #{tpu_custom_call.1} parent=23 // pred_fallthru
          _
        %s144 = sand.u32 %s27, 1
        %s145 = scalar_lea.sflag [#allocation3], %s144
        %s146 = sand.u32 %s27, 1
        %s147 = smul.addr %s146, 256
        %s148 = scalar_lea.vmem [#allocation2], %s147
        %p149 = pneg %p40
        %p150 = pneg %p37
        %p151 = pneg %p61
        %p152 = pneg %p58
        %p153 = pneg %p82
        %p154 = pneg %p79
        %s155 = smul.u32 32, %s19
        %s156 = ssub.s32 125, %s155
        %p157 = scmp.lt.s32.totalorder %s156, 32
        %s158 = scalar_select %p157, %s156, 32
        %s159 = smul.u32 128, %s158
        %p160 = scmp.eq.s32.totalorder %s19, 0
        // Predicated region
        $region29: #{tpu_custom_call.1} parent=23 // pred_check
          %p161 = pneg %p160
        $region30: #{tpu_custom_call.1} parent=23 // pred_check_branch
          %163 = sbr.rel (%p161) target = $region32
        $region31: #{tpu_custom_call.1} parent=23 // pred_region
          %164 = vst [vmem:[#allocation5] sm:$0x1] 0.0
          %165 = vst [vmem:[#allocation6] sm:$0x1] 0.0
        $region32: #{tpu_custom_call.1} parent=23 // pred_fallthru
          _
        %v166 = vld [vmem:[%s139] sm:$0xff]
        %v167 = vld [vmem:[%s139 + $0x8] sm:$0xff]
        %v168 = vld [vmem:[%s139 + $0x10] sm:$0xff]
        %v169 = vld [vmem:[%s139 + $0x18] sm:$0xff]
        %v170 = vld [vmem:[%s139 + $0x20] sm:$0xff]
        %v171 = vld [vmem:[%s139 + $0x28] sm:$0xff]
        %v172 = vld [vmem:[%s139 + $0x30] sm:$0xff]
        %v173 = vld [vmem:[%s139 + $0x38] sm:$0xff]
        %v174 = vld [vmem:[%s139 + $0x40] sm:$0xff]
        %v175 = vld [vmem:[%s139 + $0x48] sm:$0xff]
        %v176 = vld [vmem:[%s139 + $0x50] sm:$0xff]
        %v177 = vld [vmem:[%s139 + $0x58] sm:$0xff]
        %v178 = vld [vmem:[%s139 + $0x60] sm:$0xff]
        %v179 = vld [vmem:[%s139 + $0x68] sm:$0xff]
        %v180 = vld [vmem:[%s139 + $0x70] sm:$0xff]
        %v181 = vld [vmem:[%s139 + $0x78] sm:$0xff]
        %v182 = vld [vmem:[%s139 + $0x80] sm:$0xff]
        %v183 = vld [vmem:[%s139 + $0x88] sm:$0xff]
        %v184 = vld [vmem:[%s139 + $0x90] sm:$0xff]
        %v185 = vld [vmem:[%s139 + $0x98] sm:$0xff]
        %v186 = vld [vmem:[%s139 + $0xa0] sm:$0xff]
        %v187 = vld [vmem:[%s139 + $0xa8] sm:$0xff]
        %v188 = vld [vmem:[%s139 + $0xb0] sm:$0xff]
        %v189 = vld [vmem:[%s139 + $0xb8] sm:$0xff]
        %v190 = vld [vmem:[%s139 + $0xc0] sm:$0xff]
        %v191 = vld [vmem:[%s139 + $0xc8] sm:$0xff]
        %v192 = vld [vmem:[%s139 + $0xd0] sm:$0xff]
        %v193 = vld [vmem:[%s139 + $0xd8] sm:$0xff]
        %v194 = vld [vmem:[%s139 + $0xe0] sm:$0xff]
        %v195 = vld [vmem:[%s139 + $0xe8] sm:$0xff]
        %v196 = vld [vmem:[%s139 + $0xf0] sm:$0xff]
        %v197 = vld [vmem:[%s139 + $0xf8] sm:$0xff]
        %v198 = vlaneseq
        %v199 = vshrl.u32 %v198, 7
        %v200 = vadd.s32 %v199, 8
        %v201 = vadd.s32 %v199, 16
        %v202 = vadd.s32 %v199, 24
        %v203 = vadd.s32 %v199, 32
        %v204 = vadd.s32 %v199, 40
        %v205 = vadd.s32 %v199, 48
        %v206 = vadd.s32 %v199, 56
        %v207 = vadd.s32 %v199, 64
        %v208 = vadd.s32 %v199, 72
        %v209 = vadd.s32 %v199, 80
        %v210 = vadd.s32 %v199, 88
        %v211 = vadd.s32 %v199, 96
        %v212 = vadd.s32 %v199, 104
        %v213 = vadd.s32 %v199, 112
        %v214 = vadd.s32 %v199, 120
        %v215 = vadd.s32 %v199, 128
        %v216 = vadd.s32 %v199, 136
        %v217 = vadd.s32 %v199, 144
        %v218 = vadd.s32 %v199, 152
        %v219 = vadd.s32 %v199, 160
        %v220 = vadd.s32 %v199, 168
        %v221 = vadd.s32 %v199, 176
        %v222 = vadd.s32 %v199, 184
        %v223 = vadd.s32 %v199, 192
        %v224 = vadd.s32 %v199, 200
        %v225 = vadd.s32 %v199, 208
        %v226 = vadd.s32 %v199, 216
        %v227 = vadd.s32 %v199, 224
        %v228 = vadd.s32 %v199, 232
        %v229 = vadd.s32 %v199, 240
        %v230 = vadd.s32 %v199, 248
        %s231 = smul.u32 %s19, 256
        %v232 = vstv %s231
        %v233 = vadd.s32 %v199, %v232
        %v234 = vadd.s32 %v200, %v232
        %v235 = vadd.s32 %v201, %v232
        %v236 = vadd.s32 %v202, %v232
        %v237 = vadd.s32 %v203, %v232
        %v238 = vadd.s32 %v204, %v232
        %v239 = vadd.s32 %v205, %v232
        %v240 = vadd.s32 %v206, %v232
        %v241 = vadd.s32 %v207, %v232
        %v242 = vadd.s32 %v208, %v232
        %v243 = vadd.s32 %v209, %v232
        %v244 = vadd.s32 %v210, %v232
        %v245 = vadd.s32 %v211, %v232
        %v246 = vadd.s32 %v212, %v232
        %v247 = vadd.s32 %v213, %v232
        %v248 = vadd.s32 %v214, %v232
        %v249 = vadd.s32 %v215, %v232
        %v250 = vadd.s32 %v216, %v232
        %v251 = vadd.s32 %v217, %v232
        %v252 = vadd.s32 %v218, %v232
        %v253 = vadd.s32 %v219, %v232
        %v254 = vadd.s32 %v220, %v232
        %v255 = vadd.s32 %v221, %v232
        %v256 = vadd.s32 %v222, %v232
        %v257 = vadd.s32 %v223, %v232
        %v258 = vadd.s32 %v224, %v232
        %v259 = vadd.s32 %v225, %v232
        %v260 = vadd.s32 %v226, %v232
        %v261 = vadd.s32 %v227, %v232
        %v262 = vadd.s32 %v228, %v232
        %v263 = vadd.s32 %v229, %v232
        %v264 = vadd.s32 %v230, %v232
        %vm265 = vcmp.lt.s32.totalorder %v233, 1000
        %vm266 = vcmp.lt.s32.totalorder %v234, 1000
        %vm267 = vcmp.lt.s32.totalorder %v235, 1000
        %vm268 = vcmp.lt.s32.totalorder %v236, 1000
        %vm269 = vcmp.lt.s32.totalorder %v237, 1000
        %vm270 = vcmp.lt.s32.totalorder %v238, 1000
        %vm271 = vcmp.lt.s32.totalorder %v239, 1000
        %vm272 = vcmp.lt.s32.totalorder %v240, 1000
        %vm273 = vcmp.lt.s32.totalorder %v241, 1000
        %vm274 = vcmp.lt.s32.totalorder %v242, 1000
        %vm275 = vcmp.lt.s32.totalorder %v243, 1000
        %vm276 = vcmp.lt.s32.totalorder %v244, 1000
        %vm277 = vcmp.lt.s32.totalorder %v245, 1000
        %vm278 = vcmp.lt.s32.totalorder %v246, 1000
        %vm279 = vcmp.lt.s32.totalorder %v247, 1000
        %vm280 = vcmp.lt.s32.totalorder %v248, 1000
        %vm281 = vcmp.lt.s32.totalorder %v249, 1000
        %vm282 = vcmp.lt.s32.totalorder %v250, 1000
        %vm283 = vcmp.lt.s32.totalorder %v251, 1000
        %vm284 = vcmp.lt.s32.totalorder %v252, 1000
        %vm285 = vcmp.lt.s32.totalorder %v253, 1000
        %vm286 = vcmp.lt.s32.totalorder %v254, 1000
        %vm287 = vcmp.lt.s32.totalorder %v255, 1000
        %vm288 = vcmp.lt.s32.totalorder %v256, 1000
        %vm289 = vcmp.lt.s32.totalorder %v257, 1000
        %vm290 = vcmp.lt.s32.totalorder %v258, 1000
        %vm291 = vcmp.lt.s32.totalorder %v259, 1000
        %vm292 = vcmp.lt.s32.totalorder %v260, 1000
        %vm293 = vcmp.lt.s32.totalorder %v261, 1000
        %vm294 = vcmp.lt.s32.totalorder %v262, 1000
        %vm295 = vcmp.lt.s32.totalorder %v263, 1000
        %vm296 = vcmp.lt.s32.totalorder %v264, 1000
        %v297 = vsel %vm265, %v166, 0.0
        %v298 = vsel %vm266, %v167, 0.0
        %v299 = vsel %vm267, %v168, 0.0
        %v300 = vsel %vm268, %v169, 0.0
        %v301 = vsel %vm269, %v170, 0.0
        %v302 = vsel %vm270, %v171, 0.0
        %v303 = vsel %vm271, %v172, 0.0
        %v304 = vsel %vm272, %v173, 0.0
        %v305 = vsel %vm273, %v174, 0.0
        %v306 = vsel %vm274, %v175, 0.0
        %v307 = vsel %vm275, %v176, 0.0
        %v308 = vsel %vm276, %v177, 0.0
        %v309 = vsel %vm277, %v178, 0.0
        %v310 = vsel %vm278, %v179, 0.0
        %v311 = vsel %vm279, %v180, 0.0
        %v312 = vsel %vm280, %v181, 0.0
        %v313 = vsel %vm281, %v182, 0.0
        %v314 = vsel %vm282, %v183, 0.0
        %v315 = vsel %vm283, %v184, 0.0
        %v316 = vsel %vm284, %v185, 0.0
        %v317 = vsel %vm285, %v186, 0.0
        %v318 = vsel %vm286, %v187, 0.0
        %v319 = vsel %vm287, %v188, 0.0
        %v320 = vsel %vm288, %v189, 0.0
        %v321 = vsel %vm289, %v190, 0.0
        %v322 = vsel %vm290, %v191, 0.0
        %v323 = vsel %vm291, %v192, 0.0
        %v324 = vsel %vm292, %v193, 0.0
        %v325 = vsel %vm293, %v194, 0.0
        %v326 = vsel %vm294, %v195, 0.0
        %v327 = vsel %vm295, %v196, 0.0
        %v328 = vsel %vm296, %v197, 0.0
        %v329 = vld [vmem:[#allocation5] sm:$0x1]
        %v330 = vadd.f32 %v297, %v298
        %v331 = vadd.f32 %v330, %v299
        %v332 = vadd.f32 %v331, %v300
        %v333 = vadd.f32 %v332, %v301
        %v334 = vadd.f32 %v333, %v302
        %v335 = vadd.f32 %v334, %v303
        %v336 = vadd.f32 %v335, %v304
        %v337 = vadd.f32 %v336, %v305
        %v338 = vadd.f32 %v337, %v306
        %v339 = vadd.f32 %v338, %v307
        %v340 = vadd.f32 %v339, %v308
        %v341 = vadd.f32 %v340, %v309
        %v342 = vadd.f32 %v341, %v310
        %v343 = vadd.f32 %v342, %v311
        %v344 = vadd.f32 %v343, %v312
        %v345 = vadd.f32 %v344, %v313
        %v346 = vadd.f32 %v345, %v314
        %v347 = vadd.f32 %v346, %v315
        %v348 = vadd.f32 %v347, %v316
        %v349 = vadd.f32 %v348, %v317
        %v350 = vadd.f32 %v349, %v318
        %v351 = vadd.f32 %v350, %v319
        %v352 = vadd.f32 %v351, %v320
        %v353 = vadd.f32 %v352, %v321
        %v354 = vadd.f32 %v353, %v322
        %v355 = vadd.f32 %v354, %v323
        %v356 = vadd.f32 %v355, %v324
        %v357 = vadd.f32 %v356, %v325
        %v358 = vadd.f32 %v357, %v326
        %v359 = vadd.f32 %v358, %v327
        %v360 = vadd.f32 %v359, %v328
        %v361 = vrot.slane %v360, 4
        %v362 = vadd.f32 %v360, %v361
        %v363 = vrot.slane %v362, 2
        %v364 = vadd.f32 %v362, %v363
        %v365 = vrot.slane %v364, 1
        %v366 = vadd.f32 %v364, %v365
        %v367 = vadd.f32 %v329, %v366
        %368 = vst [vmem:[#allocation5] sm:$0x1] %v367
        %v369 = vld [vmem:[#allocation6] sm:$0x1]
        %v370 = vmul.f32 %v297, %v297
        %v371 = vmul.f32 %v298, %v298
        %v372 = vmul.f32 %v299, %v299
        %v373 = vmul.f32 %v300, %v300
        %v374 = vmul.f32 %v301, %v301
        %v375 = vmul.f32 %v302, %v302
        %v376 = vmul.f32 %v303, %v303
        %v377 = vmul.f32 %v304, %v304
        %v378 = vmul.f32 %v305, %v305
        %v379 = vmul.f32 %v306, %v306
        %v380 = vmul.f32 %v307, %v307
        %v381 = vmul.f32 %v308, %v308
        %v382 = vmul.f32 %v309, %v309
        %v383 = vmul.f32 %v310, %v310
        %v384 = vmul.f32 %v311, %v311
        %v385 = vmul.f32 %v312, %v312
        %v386 = vmul.f32 %v313, %v313
        %v387 = vmul.f32 %v314, %v314
        %v388 = vmul.f32 %v315, %v315
        %v389 = vmul.f32 %v316, %v316
        %v390 = vmul.f32 %v317, %v317
        %v391 = vmul.f32 %v318, %v318
        %v392 = vmul.f32 %v319, %v319
        %v393 = vmul.f32 %v320, %v320
        %v394 = vmul.f32 %v321, %v321
        %v395 = vmul.f32 %v322, %v322
        %v396 = vmul.f32 %v323, %v323
        %v397 = vmul.f32 %v324, %v324
        %v398 = vmul.f32 %v325, %v325
        %v399 = vmul.f32 %v326, %v326
        %v400 = vmul.f32 %v327, %v327
        %v401 = vmul.f32 %v328, %v328
        %v402 = vadd.f32 %v370, %v371
        %v403 = vadd.f32 %v402, %v372
        %v404 = vadd.f32 %v403, %v373
        %v405 = vadd.f32 %v404, %v374
        %v406 = vadd.f32 %v405, %v375
        %v407 = vadd.f32 %v406, %v376
        %v408 = vadd.f32 %v407, %v377
        %v409 = vadd.f32 %v408, %v378
        %v410 = vadd.f32 %v409, %v379
        %v411 = vadd.f32 %v410, %v380
        %v412 = vadd.f32 %v411, %v381
        %v413 = vadd.f32 %v412, %v382
        %v414 = vadd.f32 %v413, %v383
        %v415 = vadd.f32 %v414, %v384
        %v416 = vadd.f32 %v415, %v385
        %v417 = vadd.f32 %v416, %v386
        %v418 = vadd.f32 %v417, %v387
        %v419 = vadd.f32 %v418, %v388
        %v420 = vadd.f32 %v419, %v389
        %v421 = vadd.f32 %v420, %v390
        %v422 = vadd.f32 %v421, %v391
        %v423 = vadd.f32 %v422, %v392
        %v424 = vadd.f32 %v423, %v393
        %v425 = vadd.f32 %v424, %v394
        %v426 = vadd.f32 %v425, %v395
        %v427 = vadd.f32 %v426, %v396
        %v428 = vadd.f32 %v427, %v397
        %v429 = vadd.f32 %v428, %v398
        %v430 = vadd.f32 %v429, %v399
        %v431 = vadd.f32 %v430, %v400
        %v432 = vadd.f32 %v431, %v401
        %v433 = vrot.slane %v432, 4
        %v434 = vadd.f32 %v432, %v433
        %v435 = vrot.slane %v434, 2
        %v436 = vadd.f32 %v434, %v435
        %v437 = vrot.slane %v436, 1
        %v438 = vadd.f32 %v436, %v437
        %v439 = vadd.f32 %v369, %v438
        %440 = vst [vmem:[#allocation6] sm:$0x1] %v439
        // Predicated region
        $region33: #{tpu_custom_call.1} parent=23 // pred_check
          %p441 = pneg %p58
        $region34: #{tpu_custom_call.1} parent=23 // pred_check_branch
          %443 = sbr.rel (%p441) target = $region36
        $region35: #{tpu_custom_call.1} parent=23 // pred_region
          %s445 = ssub.s32 16, 16
          %446 = vsyncadd [#allocation4], %s445
          %s448 = sshll.u32 [#allocation5], 4
          %s449 = int_to_ptr.vmem [resolvable:$true] %s448
          %451 = dma.vmem_to_hbm [thread:$0]  %s449, 16, %s1, [#allocation4]
        $region36: #{tpu_custom_call.1} parent=23 // pred_fallthru
          _
        // Predicated region
        $region37: #{tpu_custom_call.1} parent=23 // pred_check
          %p452 = pneg %p79
        $region38: #{tpu_custom_call.1} parent=23 // pred_check_branch
          %454 = sbr.rel (%p452) target = $region40
        $region39: #{tpu_custom_call.1} parent=23 // pred_region
          %s456 = ssub.s32 16, 16
          %457 = vsyncadd [#allocation7], %s456
          %s459 = sshll.u32 [#allocation6], 4
          %s460 = int_to_ptr.vmem [resolvable:$true] %s459
          %462 = dma.vmem_to_hbm [thread:$0]  %s460, 16, %s2, [#allocation7]
        $region40: #{tpu_custom_call.1} parent=23 // pred_fallthru
          _
        // Predicated region
        $region41: #{tpu_custom_call.1} parent=23 // pred_check
          %p463 = pneg %p58
        $region42: #{tpu_custom_call.1} parent=23 // pred_check_branch
          %465 = sbr.rel (%p463) target = $region44
        $region43: #{tpu_custom_call.1} parent=23 // pred_region
          %466 = dma.done [#allocation4], 16
        $region44: #{tpu_custom_call.1} parent=23 // pred_fallthru
          _
        // Predicated region
        $region45: #{tpu_custom_call.1} parent=23 // pred_check
          %p467 = pneg %p79
        $region46: #{tpu_custom_call.1} parent=23 // pred_check_branch
          %469 = sbr.rel (%p467) target = $region48
        $region47: #{tpu_custom_call.1} parent=23 // pred_region
          %470 = dma.done [#allocation7], 16
        $region48: #{tpu_custom_call.1} parent=23 // pred_fallthru
          _
      $region24: #{tpu_custom_call.1} parent=5 // pred_fallthru
        _
      %p471 = scmp.le.s32.totalorder 2, %s14
      // Predicated region
      $region49: #{tpu_custom_call.1} parent=5 // pred_check
        %p472 = pneg %p471
      $region50: #{tpu_custom_call.1} parent=5 // pred_check_branch
        %474 = sbr.rel (%p472) target = $region52
      $region51: #{tpu_custom_call.1} parent=5 // pred_region
        %s475 = ssub.s32 %s14, 2
      $region52: #{tpu_custom_call.1} parent=5 // pred_fallthru
        _
    $region6: #{tpu_custom_call.1} parent=1 // loop_footer
      %s18 = sadd.s32 1, %s14
    $region7: #{tpu_custom_call.1} parent=1 // loop_footer_branch
      %13 = sbr.rel target = $region3
    $region8: #{tpu_custom_call.1} parent=1 // loop_exit
      _
    %476 = vsyncpa [#allocation3], 1
    %s477 = scalar_lea.sflag [#allocation3], 1
    %478 = vsyncpa %s477, 1
    %479 = vsyncpa [#allocation4], 1
    %s480 = scalar_lea.sflag [#allocation4], 1
    %481 = vsyncpa %s480, 1
    %482 = vsyncpa [#allocation7], 1

</llo_original>
